<compile_context>
chip_gen: v6e
topology: v6e:2x2x1
jax: 0.10.0
libtpu: 0.0.40
codegen_flags: <defaults>
</compile_context>

<pallas_src>
import math

import jax
import jax.numpy as jnp
import numpy as np
from jax.experimental import pallas as pl
from jax.experimental.pallas import tpu as pltpu


_LANE_PAD_MIN_N = 512  # only lane-pad the contraction axis for big graphs


def _ceil_div(a, b):
    return -(-a // b)


def _vmem_plan():
    """(vmem_limit_bytes, tile_budget_bytes, min_row_tiles) for this TPU generation."""
    phys = 128 << 20
    try:
        info = pltpu.get_tpu_info()
        phys = int(getattr(info, "vmem_capacity_bytes", phys) or phys)
    except Exception:
        pass
    if phys >= (100 << 20):
        # v5e / v6e: 128 MiB physical VMEM, single TensorCore per chip.
        vmem_limit = 100 << 20
        min_row_tiles = 1
    else:
        # v7x: 64 MiB physical per TensorCore, 2 TCs per chip.
        vmem_limit = min(phys * 3 // 4, 48 << 20)
        min_row_tiles = 2
    tile_budget = int(vmem_limit * 0.85)  # headroom for compiler internals
    return vmem_limit, tile_budget, min_row_tiles


def _pick_row_tile(n_rows, n_lanes, itemsize, oc2, budget_bytes, sublane, min_tiles):
    """Largest sublane-aligned row tile whose full double-buffered working set fits."""
    # Honest per-step accounting (everything the pipeline double-buffers):
    #   Lr + Li tiles : 2 streams * 2 bufs * TN * n_lanes * itemsize
    #   Y[k] tile     : 2 bufs * n_lanes * oc2 * itemsize
    #   fused output  : 2 bufs * TN * oc2 * 4 (f32, resident accumulator)
    #   bias          : negligible
    fixed = 2 * n_lanes * oc2 * itemsize + 2 * oc2 * 4
    per_row = 4 * n_lanes * itemsize + 2 * oc2 * 4
    avail = max(budget_bytes - fixed, per_row * sublane)
    tn = max(sublane, avail // per_row)
    # v7x: guarantee >= min_tiles row tiles so every TensorCore gets work.
    if min_tiles > 1 and n_rows >= min_tiles * sublane:
        tn = min(tn, _ceil_div(n_rows, min_tiles))
    if tn >= n_rows:
        return n_rows                       # whole graph in one row tile
    return max(sublane, (tn // sublane) * sublane)


def _sdconv_kernel(lr_ref, li_ref, y_ref, b_ref, o_ref):
    k = pl.program_id(1)

    # k is the innermost ("arbitrary") grid axis and the output block index only
    # depends on the row tile, so o_ref stays VMEM-resident across k and doubles
    # as the accumulator.  Initialise it with the (duplicated) bias at k == 0.
    @pl.when(k == 0)
    def _():
        o_ref[...] = jnp.broadcast_to(b_ref[...].astype(jnp.float32), o_ref.shape)

    y = y_ref[...]                          # [N_lane, 2*out_c], l_dtype
    pr = jnp.dot(lr_ref[...], y, preferred_element_type=jnp.float32)   # [TN, 2*oc]
    pi = jnp.dot(li_ref[...], y, preferred_element_type=jnp.float32)   # [TN, 2*oc]

    oc = o_ref.shape[-1] // 2
    real = pr[:, :oc] - pi[:, oc:]
    imag = pi[:, :oc] + pr[:, oc:]
    o_ref[...] += jnp.concatenate([real, imag], axis=-1)


def sdconv(l_real, l_imag, x_real, x_imag, weight, bias=None, *,
           l_dtype=jnp.bfloat16, row_tile=None, pad_lanes=None):
    """Pallas TPU SDConv forward.  Returns (real + bias, imag + bias)."""
    kp1, n, n2 = l_real.shape
    assert n == n2 and l_imag.shape == l_real.shape
    assert weight.shape[0] == kp1
    out_c = weight.shape[2]
    oc2 = 2 * out_c
    if bias is None:                        # module's bias=False case
        bias = jnp.zeros((1, out_c), jnp.float32)
    bias2 = jnp.concatenate([bias.astype(jnp.float32), bias.astype(jnp.float32)],
                            axis=-1)        # (1, 2*out_c)

    # Hoisted per-k projection (tiny [N,in_c]@[in_c,out_c] matmuls, done once):
    #   Y[k] = [X_real @ W[k], X_imag @ W[k]]  ->  (K+1, N, 2*out_c)
    yr = jnp.einsum('ni,kio->kno', x_real, weight, preferred_element_type=jnp.float32)
    yi = jnp.einsum('ni,kio->kno', x_imag, weight, preferred_element_type=jnp.float32)
    y = jnp.concatenate([yr, yi], axis=-1).astype(l_dtype)

    l_real = l_real.astype(l_dtype)
    l_imag = l_imag.astype(l_dtype)
    itemsize = np.dtype(l_dtype).itemsize
    sublane = 8 * max(1, 4 // itemsize)     # 8 for f32, 16 for bf16

    # Optional lane (contraction-axis) padding to a 128 multiple for big graphs,
    # so the dominant L vector loads are unmasked.  Zeros contribute nothing.
    if pad_lanes is None:
        pad_lanes = n >= _LANE_PAD_MIN_N
    n_lane = n
    if pad_lanes and n % 128 != 0:
        n_lane = _ceil_div(n, 128) * 128
        lane_pad = n_lane - n
        l_real = jnp.pad(l_real, ((0, 0), (0, 0), (0, lane_pad)))
        l_imag = jnp.pad(l_imag, ((0, 0), (0, 0), (0, lane_pad)))
        y = jnp.pad(y, ((0, 0), (0, lane_pad), (0, 0)))

    vmem_limit, tile_budget, min_row_tiles = _vmem_plan()
    tn = row_tile if row_tile is not None else _pick_row_tile(
        n, n_lane, itemsize, oc2, tile_budget, sublane, min_row_tiles)
    n_tiles = _ceil_div(n, tn)
    n_pad = n_tiles * tn
    if n_pad != n:
        # Pad only the *row* axis of L; padded rows produce bias-only output rows
        # that are sliced off below.  The contraction axis stays at n_lane.
        pad = ((0, 0), (0, n_pad - n), (0, 0))
        l_real = jnp.pad(l_real, pad)
        l_imag = jnp.pad(l_imag, pad)

    out = pl.pallas_call(
        _sdconv_kernel,
        out_shape=jax.ShapeDtypeStruct((n_pad, oc2), jnp.float32),
        grid_spec=pltpu.PrefetchScalarGridSpec(
            num_scalar_prefetch=0,
            grid=(n_tiles, kp1),            # rows "parallel", k last => "arbitrary"
            in_specs=[
                pl.BlockSpec((None, tn, n_lane), lambda i, k: (k, i, 0)),   # L_real[k] rows
                pl.BlockSpec((None, tn, n_lane), lambda i, k: (k, i, 0)),   # L_imag[k] rows
                pl.BlockSpec((None, n_lane, oc2), lambda i, k: (k, 0, 0)),  # Y[k]
                pl.BlockSpec((1, oc2), lambda i, k: (0, 0)),                # fused bias
            ],
            out_specs=pl.BlockSpec((tn, oc2), lambda i, k: (i, 0)),         # fused [real|imag]
        ),
        compiler_params=pltpu.CompilerParams(
            dimension_semantics=("parallel", "arbitrary"),
            vmem_limit_bytes=vmem_limit),
    )(l_real, l_imag, y, bias2)

    out = out[:n]
    return out[:, :out_c], out[:, out_c:]


def sdconv_forward(data, l_real, l_imag, weight, bias, **kw):
    """Mirror of SDConv.forward: data = stacked [X_real, X_imag]."""
    return sdconv(l_real, l_imag, data[0], data[1], weight, bias, **kw)


# ---------------------------------------------------------------------------
# Pure-JAX reference (mirrors process() + the fork/sum/bias in SDConv.forward)
# ---------------------------------------------------------------------------
def sdconv_reference(l_real, l_imag, x_real, x_imag, weight, bias):
    acc_r = jnp.zeros((x_real.shape[0], weight.shape[2]), jnp.float32)
    acc_i = jnp.zeros((x_real.shape[0], weight.shape[2]), jnp.float32)
    for k in range(l_real.shape[0]):
        lr, li, wk = l_real[k], l_imag[k], weight[k]
        acc_r = acc_r + (lr @ x_real) @ wk + (-(li @ x_imag)) @ wk
        acc_i = acc_i + (li @ x_real) @ wk + (lr @ x_imag) @ wk
    return acc_r + bias, acc_i + bias


if __name__ == "__main__":
    key = jax.random.PRNGKey(0)

    def make_inputs(key, K, N, in_c, out_c):
        ks = jax.random.split(key, 6)
        l_real = jax.random.normal(ks[0], (K + 1, N, N), jnp.float32) * 0.1
        l_imag = jax.random.normal(ks[1], (K + 1, N, N), jnp.float32) * 0.1
        x_real = jax.random.normal(ks[2], (N, in_c), jnp.float32)
        x_imag = jax.random.normal(ks[3], (N, in_c), jnp.float32)
        stdv = 1.0 / math.sqrt(out_c)
        weight = jax.random.uniform(ks[4], (K + 1, in_c, out_c), jnp.float32, -stdv, stdv)
        bias = jax.random.normal(ks[5], (1, out_c), jnp.float32) * 0.1
        return l_real, l_imag, x_real, x_imag, weight, bias

    k1, k2, k3 = jax.random.split(key, 3)

    # 1) Single-row-tile path (typical small graph), f32 Laplacian — tight check.
    args = make_inputs(k1, K=2, N=64, in_c=8, out_c=16)
    out_r, out_i = sdconv(*args, l_dtype=jnp.float32)
    jax.block_until_ready((out_r, out_i))
    ref_r, ref_i = sdconv_reference(*args)
    np.testing.assert_allclose(np.asarray(out_r), np.asarray(ref_r), atol=1e-4, rtol=1e-4)
    np.testing.assert_allclose(np.asarray(out_i), np.asarray(ref_i), atol=1e-4, rtol=1e-4)

    # 2) Multi-row-tile path with N not a multiple of the tile (row padding +
    #    ("parallel", "arbitrary") grid with resident fused accumulator).
    args2 = make_inputs(k2, K=2, N=56, in_c=4, out_c=8)
    out_r2, out_i2 = sdconv(*args2, l_dtype=jnp.float32, row_tile=16)
    jax.block_until_ready((out_r2, out_i2))
    ref_r2, ref_i2 = sdconv_reference(*args2)
    np.testing.assert_allclose(np.asarray(out_r2), np.asarray(ref_r2), atol=1e-4, rtol=1e-4)
    np.testing.assert_allclose(np.asarray(out_i2), np.asarray(ref_i2), atol=1e-4, rtol=1e-4)

    # 3) Default bf16 Laplacian/Y stream (bandwidth lever); f32 accumulation,
    #    compared against the f32 reference with a looser tolerance.
    out_r3, out_i3 = sdconv(*args)
    jax.block_until_ready((out_r3, out_i3))
    np.testing.assert_allclose(np.asarray(out_r3), np.asarray(ref_r), atol=5e-2, rtol=5e-2)
    np.testing.assert_allclose(np.asarray(out_i3), np.asarray(ref_i), atol=5e-2, rtol=5e-2)

    # 4) Lane-padding path (contraction axis padded to a 128 multiple), f32.
    args4 = make_inputs(k3, K=1, N=136, in_c=4, out_c=8)
    out_r4, out_i4 = sdconv(*args4, l_dtype=jnp.float32, pad_lanes=True)
    jax.block_until_ready((out_r4, out_i4))
    ref_r4, ref_i4 = sdconv_reference(*args4)
    np.testing.assert_allclose(np.asarray(out_r4), np.asarray(ref_r4), atol=1e-4, rtol=1e-4)
    np.testing.assert_allclose(np.asarray(out_i4), np.asarray(ref_i4), atol=1e-4, rtol=1e-4)

    print("KERNEL_OK")
</pallas_src>

<mosaic_0001>
module attributes {stable_mosaic.version = 11 : i64} {
  func.func @_sdconv_kernel(%arg0: i32, %arg1: i32, %arg2: memref<1x64x64xf32, #tpu.memory_space<vmem>>, %arg3: memref<1x64x64xf32, #tpu.memory_space<vmem>>, %arg4: memref<1x64x32xf32, #tpu.memory_space<vmem>>, %arg5: memref<1x32xf32, #tpu.memory_space<vmem>>, %arg6: memref<64x32xf32, #tpu.memory_space<vmem>>) attributes {dimension_semantics = [#tpu.dimension_semantics<parallel>, #tpu.dimension_semantics<arbitrary>], iteration_bounds = array<i64: 1, 3>, scalar_prefetch = 0 : i64, scratch_operands = 0 : i64, tpu.core_type = #tpu.core_type<tc>, window_params = [{transform_indices = @transform_0, window_bounds = array<i64: 1, 64, 64>}, {transform_indices = @transform_1, window_bounds = array<i64: 1, 64, 64>}, {transform_indices = @transform_2, window_bounds = array<i64: 1, 64, 32>}, {pipeline_mode = #tpu.pipeline_mode<synchronous>, transform_indices = @transform_3, window_bounds = array<i64: 1, 32>}, {transform_indices = @transform_4, window_bounds = array<i64: 64, 32>}]} {
    %c0_i32 = arith.constant 0 : i32
    %0 = arith.cmpi eq, %arg1, %c0_i32 : i32
    %1 = arith.extui %0 : i1 to i32
    %c0_i32_0 = arith.constant 0 : i32
    %2 = arith.cmpi ne, %1, %c0_i32_0 : i32
    scf.if %2 {
      %c0_14 = arith.constant 0 : index
      %c0_15 = arith.constant 0 : index
      %21 = vector.load %arg5[%c0_14, %c0_15] : memref<1x32xf32, #tpu.memory_space<vmem>>, vector<1x32xf32>
      %22 = vector.shape_cast %21 : vector<1x32xf32> to vector<1x32xf32>
      %23 = vector.broadcast %22 : vector<1x32xf32> to vector<64x32xf32>
      %c0_16 = arith.constant 0 : index
      %c0_17 = arith.constant 0 : index
      %24 = vector.load %arg6[%c0_16, %c0_17] : memref<64x32xf32, #tpu.memory_space<vmem>>, vector<64x32xf32>
      tpu.vector_store %arg6[%c0_16, %c0_17], %23 {strides = array<i32>} : memref<64x32xf32, #tpu.memory_space<vmem>>, vector<64x32xf32>,
    } else {
    }
    %c0 = arith.constant 0 : index
    %c0_1 = arith.constant 0 : index
    %c0_2 = arith.constant 0 : index
    %3 = vector.load %arg4[%c0, %c0_1, %c0_2] : memref<1x64x32xf32, #tpu.memory_space<vmem>>, vector<1x64x32xf32>
    %4 = vector.shape_cast %3 : vector<1x64x32xf32> to vector<64x32xf32>
    %c0_3 = arith.constant 0 : index
    %c0_4 = arith.constant 0 : index
    %c0_5 = arith.constant 0 : index
    %5 = vector.load %arg2[%c0_3, %c0_4, %c0_5] : memref<1x64x64xf32, #tpu.memory_space<vmem>>, vector<1x64x64xf32>
    %6 = vector.shape_cast %5 : vector<1x64x64xf32> to vector<64x64xf32>
    %cst = arith.constant dense<0.000000e+00> : vector<64x32xf32>
    %7 = tpu.matmul %6, %4, %cst {dimension_numbers = #tpu.dot_dimension_numbers<[1], [0], [0], [1], [0, 0, 1, 1], [], []>} : vector<64x64xf32>, vector<64x32xf32>, vector<64x32xf32> -> vector<64x32xf32>
    %c0_6 = arith.constant 0 : index
    %c0_7 = arith.constant 0 : index
    %c0_8 = arith.constant 0 : index
    %8 = vector.load %arg3[%c0_6, %c0_7, %c0_8] : memref<1x64x64xf32, #tpu.memory_space<vmem>>, vector<1x64x64xf32>
    %9 = vector.shape_cast %8 : vector<1x64x64xf32> to vector<64x64xf32>
    %cst_9 = arith.constant dense<0.000000e+00> : vector<64x32xf32>
    %10 = tpu.matmul %9, %4, %cst_9 {dimension_numbers = #tpu.dot_dimension_numbers<[1], [0], [0], [1], [0, 0, 1, 1], [], []>} : vector<64x64xf32>, vector<64x32xf32>, vector<64x32xf32> -> vector<64x32xf32>
    %11 = vector.extract_strided_slice %7 {offsets = [0, 0], sizes = [64, 16], strides = [1, 1]} : vector<64x32xf32> to vector<64x16xf32>
    %12 = vector.extract_strided_slice %10 {offsets = [0, 16], sizes = [64, 16], strides = [1, 1]} : vector<64x32xf32> to vector<64x16xf32>
    %13 = arith.subf %11, %12 : vector<64x16xf32>
    %14 = vector.extract_strided_slice %10 {offsets = [0, 0], sizes = [64, 16], strides = [1, 1]} : vector<64x32xf32> to vector<64x16xf32>
    %15 = vector.extract_strided_slice %7 {offsets = [0, 16], sizes = [64, 16], strides = [1, 1]} : vector<64x32xf32> to vector<64x16xf32>
    %16 = arith.addf %14, %15 : vector<64x16xf32>
    %c0_10 = arith.constant 0 : index
    %c0_11 = arith.constant 0 : index
    %17 = vector.load %arg6[%c0_10, %c0_11] : memref<64x32xf32, #tpu.memory_space<vmem>>, vector<64x32xf32>
    %18 = tpu.concatenate %13, %16 in 1 : vector<64x16xf32>, vector<64x16xf32> -> vector<64x32xf32>
    %19 = arith.addf %17, %18 : vector<64x32xf32>
    %c0_12 = arith.constant 0 : index
    %c0_13 = arith.constant 0 : index
    %20 = vector.load %arg6[%c0_12, %c0_13] : memref<64x32xf32, #tpu.memory_space<vmem>>, vector<64x32xf32>
    tpu.vector_store %arg6[%c0_12, %c0_13], %19 {strides = array<i32>} : memref<64x32xf32, #tpu.memory_space<vmem>>, vector<64x32xf32>,
    return
  }
  func.func @transform_0(%arg0: i32, %arg1: i32) -> (i32, i32, i32) {
    %c0_i32 = arith.constant 0 : i32
    %c0_i32_0 = arith.constant 0 : i32
    return %arg1, %arg0, %c0_i32 : i32, i32, i32
  }
  func.func @transform_1(%arg0: i32, %arg1: i32) -> (i32, i32, i32) {
    %c0_i32 = arith.constant 0 : i32
    %c0_i32_0 = arith.constant 0 : i32
    return %arg1, %arg0, %c0_i32 : i32, i32, i32
  }
  func.func @transform_2(%arg0: i32, %arg1: i32) -> (i32, i32, i32) {
    %c0_i32 = arith.constant 0 : i32
    %c0_i32_0 = arith.constant 0 : i32
    %c0_i32_1 = arith.constant 0 : i32
    return %arg1, %c0_i32, %c0_i32_0 : i32, i32, i32
  }
  func.func @transform_3(%arg0: i32, %arg1: i32) -> (i32, i32) {
    %c0_i32 = arith.constant 0 : i32
    %c0_i32_0 = arith.constant 0 : i32
    %c0_i32_1 = arith.constant 0 : i32
    return %c0_i32, %c0_i32_0 : i32, i32
  }
  func.func @transform_4(%arg0: i32, %arg1: i32) -> (i32, i32) {
    %c0_i32 = arith.constant 0 : i32
    %c0_i32_0 = arith.constant 0 : i32
    return %arg0, %c0_i32 : i32, i32
  }
}

</mosaic_0001>

<llo_original>
// kernel: tpu_custom_call.1
$region0: #{tpu_custom_call.1}
  #allocation0 [shape = 'u32[]', space=smem, size = 0x4, offset = 0x4, fixed_abs, tag = 'smem constant byte address 0x4 - core index']
  #allocation1 [shape = 'u32[144,128]{1,0:T(1,128)}', space=vmem, size = 0x12000, scoped, tag = 'internal scratch']
  %s0 = inlined_call_operand.vmem [shape: f32[3,64,64], index: 0, kind: input, shape index: {}]
  %s1 = inlined_call_operand.hbm [shape: f32[3,64,64], index: 1, kind: input, shape index: {}]
  %s2 = inlined_call_operand.vmem [shape: f32[3,64,32], index: 2, kind: input, shape index: {}]
  %s3 = inlined_call_operand.vmem [shape: f32[1,32], index: 3, kind: input, shape index: {}]
  %s4 = inlined_call_operand.vmem [shape: f32[64,32], index: 4, kind: output, shape index: {}]
  %s5 = sld [smem:[#allocation0]]
  $region57: #{tpu_custom_call.1} parent=0
    _
  %s7 = ssub.s32 1, %s5
  %s8 = scalar_select 0, %s7, %s5
  $region1: #{tpu_custom_call.1} parent=0
    #allocation2 [shape = 'u8[65536]{0}', space=vmem, size = 0x10000, scoped, tag = 'input window, operand 1']
    #allocation3 [shape = 's32[2]{0}', space=sflag, size = 0x8, scoped, tag = 'scoped memory for tpu_custom_call.1']
    %9 = vsyncpa [#allocation3], 0
    %s10 = scalar_lea.sflag [#allocation3], 1
    %11 = vsyncpa %s10, 0
    loop: start=0, step=1, limit=5
    $region2: #{tpu_custom_call.1} parent=1 // loop_pre_header
      _
    $region3: #{tpu_custom_call.1} parent=1 // loop_header
      %s13 = sphi 0, %s17
      %p14 = scmp.ge.s32.totalorder %s13, 5
      %s20 = sphi 0, %s32
      %s21 = sphi 0, %s28
      %s22 = sphi 0, %s20
      %s23 = sphi 0, %s21
      %s24 = sphi 0, %s22
      %s25 = sphi 0, %s23
      %s37 = sphi 0, %s39
      %s40 = sphi 0, %s37
      %s41 = sphi 0, %s40
      %s57 = sphi 0, %s41
      %s65 = sphi 0, %s67
      %s68 = sphi 0, %s65
      %s69 = sphi 0, %s68
      %s85 = sphi 0, %s69
      %s91 = sphi 0, %s93
      %s94 = sphi 0, %s91
      %s95 = sphi 0, %s94
      %s111 = sphi 0, %s95
      %s115 = sphi 0, %s115
      %s117 = sphi 0, %s115
      %s118 = sphi 0, %s117
      %s132 = sphi 0, %s118
      %s138 = sphi 0, %s140
      %s141 = sphi 0, %s138
      %s142 = sphi 0, %s141
      %s158 = sphi 0, %s142
    $region4: #{tpu_custom_call.1} parent=1 // loop_header_branch
      %16 = sbr.rel (%p14) target = $region8
    $region5: #{tpu_custom_call.1} parent=1 // loop_body
      %s18 = ssub.s32 %s13, 1
      %s19 = ssub.s32 %s13, 2
      %s26 = sadd.s32 1, %s21
      %p27 = scmp.ge.s32.totalorder %s26, 3
      %s28 = scalar_select %p27, 0, %s26
      %s29 = sadd.s32 1, %s20
      %s30 = scalar_select %p27, %s29, %s20
      %p31 = scmp.ge.s32.totalorder %s30, 1
      %s32 = scalar_select %p31, 0, %s30
      %s33 = ssub.s32 %s21, %s28
      %s34 = ssub.s32 %s20, %s32
      %s35 = sor.u32 %s33, %s34
      %p36 = scmp.eq.s32.totalorder %s35, 0
      %s38 = sadd.s32 %s37, 1
      %s39 = scalar_select %p36, %s37, %s38
      %p42 = pneg %p36
      %p43 = scmp.eq.s32.totalorder %s13, 2
      %p44 = por %p42, %p43
      %p45 = scmp.ne.s32.totalorder %s37, %s40
      %p46 = scmp.eq.s32.totalorder %s13, 0
      %p47 = por %p45, %p46
      %p48 = scmp.ne.s32.totalorder %s37, %s40
      %p49 = scmp.eq.s32.totalorder %s18, 2
      %p50 = por %p48, %p49
      %p51 = scmp.ne.s32.totalorder %s40, %s41
      %p52 = scmp.eq.s32.totalorder %s18, 0
      %p53 = por %p51, %p52
      %p54 = scmp.ne.s32.totalorder %s40, %s41
      %p55 = scmp.eq.s32.totalorder %s19, 2
      %p56 = por %p54, %p55
      %p58 = scmp.ne.s32.totalorder %s41, %s57
      %p59 = scmp.eq.s32.totalorder %s19, 0
      %p60 = por %p58, %p59
      %s61 = ssub.s32 %s21, %s28
      %s62 = ssub.s32 %s20, %s32
      %s63 = sor.u32 %s61, %s62
      %p64 = scmp.eq.s32.totalorder %s63, 0
      %s66 = sadd.s32 %s65, 1
      %s67 = scalar_select %p64, %s65, %s66
      %p70 = pneg %p64
      %p71 = scmp.eq.s32.totalorder %s13, 2
      %p72 = por %p70, %p71
      %p73 = scmp.ne.s32.totalorder %s65, %s68
      %p74 = scmp.eq.s32.totalorder %s13, 0
      %p75 = por %p73, %p74
      %p76 = scmp.ne.s32.totalorder %s65, %s68
      %p77 = scmp.eq.s32.totalorder %s18, 2
      %p78 = por %p76, %p77
      %p79 = scmp.ne.s32.totalorder %s68, %s69
      %p80 = scmp.eq.s32.totalorder %s18, 0
      %p81 = por %p79, %p80
      %p82 = scmp.ne.s32.totalorder %s68, %s69
      %p83 = scmp.eq.s32.totalorder %s19, 2
      %p84 = por %p82, %p83
      %p86 = scmp.ne.s32.totalorder %s69, %s85
      %p87 = scmp.eq.s32.totalorder %s19, 0
      %p88 = por %p86, %p87
      %s89 = ssub.s32 %s21, %s28
      %p90 = scmp.eq.s32.totalorder %s89, 0
      %s92 = sadd.s32 %s91, 1
      %s93 = scalar_select %p90, %s91, %s92
      %p96 = pneg %p90
      %p97 = scmp.eq.s32.totalorder %s13, 2
      %p98 = por %p96, %p97
      %p99 = scmp.ne.s32.totalorder %s91, %s94
      %p100 = scmp.eq.s32.totalorder %s13, 0
      %p101 = por %p99, %p100
      %p102 = scmp.ne.s32.totalorder %s91, %s94
      %p103 = scmp.eq.s32.totalorder %s18, 2
      %p104 = por %p102, %p103
      %p105 = scmp.ne.s32.totalorder %s94, %s95
      %p106 = scmp.eq.s32.totalorder %s18, 0
      %p107 = por %p105, %p106
      %p108 = scmp.ne.s32.totalorder %s94, %s95
      %p109 = scmp.eq.s32.totalorder %s19, 2
      %p110 = por %p108, %p109
      %p112 = scmp.ne.s32.totalorder %s95, %s111
      %p113 = scmp.eq.s32.totalorder %s19, 0
      %p114 = por %p112, %p113
      %s116 = sadd.s32 %s115, 1
      %p119 = scmp.eq.s32.totalorder %s13, 2
      %p120 = scmp.ne.s32.totalorder %s115, %s117
      %p121 = scmp.eq.s32.totalorder %s13, 0
      %p122 = por %p120, %p121
      %p123 = scmp.ne.s32.totalorder %s115, %s117
      %p124 = scmp.eq.s32.totalorder %s18, 2
      %p125 = por %p123, %p124
      %p126 = scmp.ne.s32.totalorder %s117, %s118
      %p127 = scmp.eq.s32.totalorder %s18, 0
      %p128 = por %p126, %p127
      %p129 = scmp.ne.s32.totalorder %s117, %s118
      %p130 = scmp.eq.s32.totalorder %s19, 2
      %p131 = por %p129, %p130
      %p133 = scmp.ne.s32.totalorder %s118, %s132
      %p134 = scmp.eq.s32.totalorder %s19, 0
      %p135 = por %p133, %p134
      %s136 = ssub.s32 %s20, %s32
      %p137 = scmp.eq.s32.totalorder %s136, 0
      %s139 = sadd.s32 %s138, 1
      %s140 = scalar_select %p137, %s138, %s139
      %p143 = pneg %p137
      %p144 = scmp.eq.s32.totalorder %s13, 2
      %p145 = por %p143, %p144
      %p146 = scmp.ne.s32.totalorder %s138, %s141
      %p147 = scmp.eq.s32.totalorder %s13, 0
      %p148 = por %p146, %p147
      %p149 = scmp.ne.s32.totalorder %s138, %s141
      %p150 = scmp.eq.s32.totalorder %s18, 2
      %p151 = por %p149, %p150
      %p152 = scmp.ne.s32.totalorder %s141, %s142
      %p153 = scmp.eq.s32.totalorder %s18, 0
      %p154 = por %p152, %p153
      %p155 = scmp.ne.s32.totalorder %s141, %s142
      %p156 = scmp.eq.s32.totalorder %s19, 2
      %p157 = por %p155, %p156
      %p159 = scmp.ne.s32.totalorder %s142, %s158
      %p160 = scmp.eq.s32.totalorder %s19, 0
      %p161 = por %p159, %p160
      %p162 = scmp.le.s32.totalorder 1, %s13
      %p163 = scmp.lt.s32.totalorder %s13, 4
      %p164 = pnand %p162, %p163
      %p165 = pneg %p164
      // Predicated region
      $region9: #{tpu_custom_call.1} parent=5 // pred_check
        _
      $region10: #{tpu_custom_call.1} parent=5 // pred_check_branch
        %167 = sbr.rel (%p164) target = $region12
      $region11: #{tpu_custom_call.1} parent=5 // pred_region
        %s168 = ssub.s32 %s13, 1
        // Predicated region
        $region13: #{tpu_custom_call.1} parent=11 // pred_check
          %p169 = pneg %p128
        $region14: #{tpu_custom_call.1} parent=11 // pred_check_branch
          %171 = sbr.rel (%p169) target = $region16
        $region15: #{tpu_custom_call.1} parent=11 // pred_region
          _
        $region16: #{tpu_custom_call.1} parent=11 // pred_fallthru
          _
      $region12: #{tpu_custom_call.1} parent=5 // pred_fallthru
        _
      %p172 = scmp.lt.s32.totalorder %s13, 3
      // Predicated region
      $region17: #{tpu_custom_call.1} parent=5 // pred_check
        %p173 = pneg %p172
      $region18: #{tpu_custom_call.1} parent=5 // pred_check_branch
        %175 = sbr.rel (%p173) target = $region20
      $region19: #{tpu_custom_call.1} parent=5 // pred_region
        // Predicated region
        $region21: #{tpu_custom_call.1} parent=19 // pred_check
          %p176 = pneg %p47
        $region22: #{tpu_custom_call.1} parent=19 // pred_check_branch
          %178 = sbr.rel (%p176) target = $region24
        $region23: #{tpu_custom_call.1} parent=19 // pred_region
          %s179 = smul.u32 8, %s20
          %p180 = scmp.lt.s32.totalorder %s21, 2
          %s181 = scalar_select %p180, %s21, 2
          %p182 = scmp.lt.s32.totalorder %s179, 7
          %s183 = scalar_select %p182, %s179, 7
          %s184 = smul.addr %s181, 8
          %s185 = sadd.s32 %s183, %s184
          %s186 = smul.addr %s185, 8
          %s187 = scalar_lea.vmem %s0, %s186
          %s188 = smul.u32 8, %s20
        $region24: #{tpu_custom_call.1} parent=19 // pred_fallthru
          _
        // Predicated region
        $region25: #{tpu_custom_call.1} parent=19 // pred_check
          %p189 = pneg %p75
        $region26: #{tpu_custom_call.1} parent=19 // pred_check_branch
          %191 = sbr.rel (%p189) target = $region28
        $region27: #{tpu_custom_call.1} parent=19 // pred_region
          %s192 = sand.u32 %s65, 1
          %s193 = scalar_lea.sflag [#allocation3], %s192
          %s194 = sand.u32 %s65, 1
          %s195 = smul.addr %s194, 64
          %s196 = scalar_lea.vmem [#allocation2], %s195
          %s197 = smul.u32 8, %s20
          %s199 = ssub.s32 1024, 1024
          %200 = vsyncadd %s193, %s199
          %s201 = smul.addr %s21, 8
          %s202 = sadd.s32 %s197, %s201
          %s203 = smul.addr %s202, 128
          %s204 = scalar_lea.hbm %s1, %s203
          %s205 = sshll.u32 %s196, 4
          %s206 = int_to_ptr.vmem [resolvable:$true] %s205
          %211 = dma.hbm_to_vmem [thread:$0]  %s204, 1024, %s206, %s193, 128, 128, 8
        $region28: #{tpu_custom_call.1} parent=19 // pred_fallthru
          _
        // Predicated region
        $region29: #{tpu_custom_call.1} parent=19 // pred_check
          %p212 = pneg %p101
        $region30: #{tpu_custom_call.1} parent=19 // pred_check_branch
          %214 = sbr.rel (%p212) target = $region32
        $region31: #{tpu_custom_call.1} parent=19 // pred_region
          %p215 = scmp.lt.s32.totalorder %s21, 2
          %s216 = scalar_select %p215, %s21, 2
          %s217 = smul.addr %s216, 8
          %s218 = smul.addr %s217, 8
          %s219 = scalar_lea.vmem %s2, %s218
        $region32: #{tpu_custom_call.1} parent=19 // pred_fallthru
          _
      $region20: #{tpu_custom_call.1} parent=5 // pred_fallthru
        _
      %p220 = scmp.le.s32.totalorder 1, %s13
      %p221 = scmp.lt.s32.totalorder %s13, 4
      %p222 = pnand %p220, %p221
      %p223 = pneg %p222
      // Predicated region
      $region33: #{tpu_custom_call.1} parent=5 // pred_check
        _
      $region34: #{tpu_custom_call.1} parent=5 // pred_check_branch
        %225 = sbr.rel (%p222) target = $region36
      $region35: #{tpu_custom_call.1} parent=5 // pred_region
        %s226 = ssub.s32 %s13, 1
        %s227 = sand.u32 %s68, 1
        %s228 = scalar_lea.sflag [#allocation3], %s227
        %s229 = sand.u32 %s68, 1
        %s230 = smul.addr %s229, 64
        %s231 = scalar_lea.vmem [#allocation2], %s230
        // Predicated region
        $region37: #{tpu_custom_call.1} parent=35 // pred_check
          %p232 = pneg %p81
        $region38: #{tpu_custom_call.1} parent=35 // pred_check_branch
          %234 = sbr.rel (%p232) target = $region40
        $region39: #{tpu_custom_call.1} parent=35 // pred_region
          %235 = dma.done %s228, 1024
        $region40: #{tpu_custom_call.1} parent=35 // pred_fallthru
          _
        %s236 = smul.u32 8, %s22
        %p237 = scmp.lt.s32.totalorder %s23, 2
        %s238 = scalar_select %p237, %s23, 2
        %p239 = scmp.lt.s32.totalorder %s236, 7
        %s240 = scalar_select %p239, %s236, 7
        %s241 = smul.addr %s238, 8
        %s242 = sadd.s32 %s240, %s241
        %s243 = smul.addr %s242, 8
        %s244 = scalar_lea.vmem %s0, %s243
        %p245 = pneg %p53
        %p246 = pneg %p50
        %s247 = sand.u32 %s68, 1
        %s248 = scalar_lea.sflag [#allocation3], %s247
        %s249 = sand.u32 %s68, 1
        %s250 = smul.addr %s249, 64
        %s251 = scalar_lea.vmem [#allocation2], %s250
        %p252 = pneg %p81
        %p253 = pneg %p78
        %p254 = scmp.lt.s32.totalorder %s23, 2
        %s255 = scalar_select %p254, %s23, 2
        %s256 = smul.addr %s255, 8
        %s257 = smul.addr %s256, 8
        %s258 = scalar_lea.vmem %s2, %s257
        %p259 = pneg %p107
        %p260 = pneg %p104
        %p261 = pneg %p128
        %p262 = pneg %p125
        %p263 = pneg %p154
        %p264 = pneg %p151
        %s265 = smul.u32 8, %s22
        %p266 = scmp.lt.s32.totalorder %s265, 7
        %s267 = scalar_select %p266, %s265, 7
        %s268 = smul.addr %s267, 8
        %s269 = scalar_lea.vmem %s4, %s268
        %s270 = smul.u32 8, %s22
        %p271 = scmp.lt.s32.totalorder %s23, 2
        %s272 = scalar_select %p271, %s23, 2
        %p273 = scmp.lt.s32.totalorder %s270, 7
        %s274 = scalar_select %p273, %s270, 7
        %s275 = smul.addr %s272, 8
        %s276 = sadd.s32 %s274, %s275
        %s277 = smul.addr %s276, 8
        %s278 = scalar_lea.vmem %s0, %s277
        %s279 = smul.u32 8, %s22
        %s280 = smul.u32 8, %s22
        %p281 = scmp.lt.s32.totalorder %s23, 2
        %s282 = scalar_select %p281, %s23, 2
        %s283 = smul.addr %s282, 8
        %s284 = smul.addr %s283, 8
        %s285 = scalar_lea.vmem %s2, %s284
        %s286 = smul.u32 8, %s22
        %p287 = scmp.lt.s32.totalorder %s286, 7
        %s288 = scalar_select %p287, %s286, 7
        %s289 = smul.addr %s288, 8
        %s290 = scalar_lea.vmem %s4, %s289
        %s291 = smul.u32 8, %s22
        %p292 = scmp.eq.s32.totalorder %s23, 0
        // Predicated region
        $region41: #{tpu_custom_call.1} parent=35 // pred_check
          %p293 = pneg %p292
        $region42: #{tpu_custom_call.1} parent=35 // pred_check_branch
          %295 = sbr.rel (%p293) target = $region44
        $region43: #{tpu_custom_call.1} parent=35 // pred_region
          %v296 = vld [vmem:[%s3] sm:$0x1]
          %v298 = vlaneseq
          %v299 = vshrl.u32 %v298, 7
          %v300 = vsub.s32 0, %v299
          %v301 = vrot.slane %v296, %v300
          %vm303 = vcmask 261120
          %304 = vst.msk [vmem:[%s290] sm:$0xff] %vm303, %v301
          %305 = vst.msk [vmem:[%s290 + $0x8] sm:$0xff] %vm303, %v301
          %306 = vst.msk [vmem:[%s290 + $0x10] sm:$0xff] %vm303, %v301
          %307 = vst.msk [vmem:[%s290 + $0x18] sm:$0xff] %vm303, %v301
          %308 = vst.msk [vmem:[%s290 + $0x20] sm:$0xff] %vm303, %v301
          %309 = vst.msk [vmem:[%s290 + $0x28] sm:$0xff] %vm303, %v301
          %310 = vst.msk [vmem:[%s290 + $0x30] sm:$0xff] %vm303, %v301
          %311 = vst.msk [vmem:[%s290 + $0x38] sm:$0xff] %vm303, %v301
        $region44: #{tpu_custom_call.1} parent=35 // pred_fallthru
          _
        %v312 = vld [vmem:[%s285] sm:$0xff]
        %v313 = vld [vmem:[%s285 + $0x8] sm:$0xff]
        %v314 = vld [vmem:[%s285 + $0x10] sm:$0xff]
        %v315 = vld [vmem:[%s285 + $0x18] sm:$0xff]
        %v316 = vld [vmem:[%s285 + $0x20] sm:$0xff]
        %v317 = vld [vmem:[%s285 + $0x28] sm:$0xff]
        %v318 = vld [vmem:[%s285 + $0x30] sm:$0xff]
        %v319 = vld [vmem:[%s285 + $0x38] sm:$0xff]
        %v320 = vld [vmem:[%s278] sm:$0xff]
        %v321 = vld [vmem:[%s278 + $0x8] sm:$0xff]
        %v322 = vld [vmem:[%s278 + $0x10] sm:$0xff]
        %v323 = vld [vmem:[%s278 + $0x18] sm:$0xff]
        %v324 = vld [vmem:[%s278 + $0x20] sm:$0xff]
        %v325 = vld [vmem:[%s278 + $0x28] sm:$0xff]
        %v326 = vld [vmem:[%s278 + $0x30] sm:$0xff]
        %v327 = vld [vmem:[%s278 + $0x38] sm:$0xff]
        %vm328 = vcmask 523264
        %v330 = vsel %vm328, %v320, 0
        %v333 = vsel %vm328, %v321, 0
        %v336 = vsel %vm328, %v322, 0
        %v339 = vsel %vm328, %v323, 0
        %v342 = vsel %vm328, %v324, 0
        %v345 = vsel %vm328, %v325, 0
        %v348 = vsel %vm328, %v326, 0
        %v351 = vsel %vm328, %v327, 0
        %353 = vmatprep.subr.mxu0 0.0
        %354 = vmatpush1.msra.mxu0 0.0
        %355 = vmatprep.subr.mxu0 0.0
        %356 = vmatpush1.msra.mxu0 0.0
        %357 = vmatprep.subr.mxu0 0.0
        %358 = vmatpush1.msra.mxu0 0.0
        %359 = vmatprep.subr.mxu0 0.0
        %360 = vmatpush1.msra.mxu0 0.0
        %361 = vmatprep.subr.mxu0 0.0
        %362 = vmatpush1.msra.mxu0 0.0
        %363 = vmatprep.subr.mxu0 0.0
        %364 = vmatpush1.msra.mxu0 0.0
        %365 = vmatprep.subr.mxu0 0.0
        %366 = vmatpush1.msra.mxu0 0.0
        %367 = vmatprep.subr.mxu0 0.0
        %368 = vmatpush1.msra.mxu0 0.0
        %369 = vmatprep.subr.mxu0 0.0
        %370 = vmatpush1.msra.mxu0 %v319
        %371 = vmatprep.subr.mxu0 0.0
        %372 = vmatpush1.msra.mxu0 %v318
        %373 = vmatprep.subr.mxu0 0.0
        %374 = vmatpush1.msra.mxu0 %v317
        %375 = vmatprep.subr.mxu0 0.0
        %376 = vmatpush1.msra.mxu0 %v316
        %377 = vmatprep.subr.mxu0 0.0
        %378 = vmatpush1.msra.mxu0 %v315
        %379 = vmatprep.subr.mxu0 0.0
        %380 = vmatpush1.msra.mxu0 %v314
        %381 = vmatprep.subr.mxu0 0.0
        %382 = vmatpush1.msra.mxu0 %v313
        %383 = vmatprep.subr.mxu0 0.0
        %384 = vmatpush1.msra.mxu0 %v312
        %385 = vmatprep.subr.mxu0 0.0
        %386 = vmatpush2.msra.mxu0 0.0
        %387 = vmatprep.subr.mxu0 0.0
        %388 = vmatpush2.msra.mxu0 0.0
        %389 = vmatprep.subr.mxu0 0.0
        %390 = vmatpush2.msra.mxu0 0.0
        %391 = vmatprep.subr.mxu0 0.0
        %392 = vmatpush2.msra.mxu0 0.0
        %393 = vmatprep.subr.mxu0 0.0
        %394 = vmatpush2.msra.mxu0 0.0
        %395 = vmatprep.subr.mxu0 0.0
        %396 = vmatpush2.msra.mxu0 0.0
        %397 = vmatprep.subr.mxu0 0.0
        %398 = vmatpush2.msra.mxu0 0.0
        %399 = vmatprep.subr.mxu0 0.0
        %400 = vmatpush2.msra.mxu0 0.0
        %401 = vmatprep.subr.mxu0 0.0
        %402 = vmatpush2.msra.mxu0 0.0
        %403 = vmatprep.subr.mxu0 0.0
        %404 = vmatpush2.msra.mxu0 0.0
        %405 = vmatprep.subr.mxu0 0.0
        %406 = vmatpush2.msra.mxu0 0.0
        %407 = vmatprep.subr.mxu0 0.0
        %408 = vmatpush2.msra.mxu0 0.0
        %409 = vmatprep.subr.mxu0 0.0
        %410 = vmatpush2.msra.mxu0 0.0
        %411 = vmatprep.subr.mxu0 0.0
        %412 = vmatpush2.msra.mxu0 0.0
        %413 = vmatprep.subr.mxu0 0.0
        %414 = vmatpush2.msra.mxu0 0.0
        %415 = vmatprep.subr.mxu0 0.0
        %416 = vmatpush2.msra.mxu0 0.0
        %417 = vmatprep.mubr.f32.mxu0 0.0
        %418 = vmatmul.mubr.f32.gmra.mxu0 %v330
        %v419 = vpop.f32.mrf.mxu0
        %v420 = vadd.f32 0.0, %v419
        %v421 = vpop.f32.mrf.mxu0
        %422 = vmatprep.mubr.f32.mxu0 0.0
        %423 = vmatmul.mubr.f32.gmra.mxu0 %v333
        %v424 = vpop.f32.mrf.mxu0
        %v425 = vadd.f32 0.0, %v424
        %v426 = vpop.f32.mrf.mxu0
        %427 = vmatprep.mubr.f32.mxu0 0.0
        %428 = vmatmul.mubr.f32.gmra.mxu0 %v336
        %v429 = vpop.f32.mrf.mxu0
        %v430 = vadd.f32 0.0, %v429
        %v431 = vpop.f32.mrf.mxu0
        %432 = vmatprep.mubr.f32.mxu0 0.0
        %433 = vmatmul.mubr.f32.gmra.mxu0 %v339
        %v434 = vpop.f32.mrf.mxu0
        %v435 = vadd.f32 0.0, %v434
        %v436 = vpop.f32.mrf.mxu0
        %437 = vmatprep.mubr.f32.mxu0 0.0
        %438 = vmatmul.mubr.f32.gmra.mxu0 %v342
        %v439 = vpop.f32.mrf.mxu0
        %v440 = vadd.f32 0.0, %v439
        %v441 = vpop.f32.mrf.mxu0
        %442 = vmatprep.mubr.f32.mxu0 0.0
        %443 = vmatmul.mubr.f32.gmra.mxu0 %v345
        %v444 = vpop.f32.mrf.mxu0
        %v445 = vadd.f32 0.0, %v444
        %v446 = vpop.f32.mrf.mxu0
        %447 = vmatprep.mubr.f32.mxu0 0.0
        %448 = vmatmul.mubr.f32.gmra.mxu0 %v348
        %v449 = vpop.f32.mrf.mxu0
        %v450 = vadd.f32 0.0, %v449
        %v451 = vpop.f32.mrf.mxu0
        %452 = vmatprep.mubr.f32.mxu0 0.0
        %453 = vmatmul.mubr.f32.gmra.mxu0 %v351
        %v454 = vpop.f32.mrf.mxu0
        %v455 = vadd.f32 0.0, %v454
        %v456 = vpop.f32.mrf.mxu0
        %457 = vdwg.mxu0
        %v458 = vld [vmem:[%s231] sm:$0xff]
        %v459 = vld [vmem:[%s231 + $0x8] sm:$0xff]
        %v460 = vld [vmem:[%s231 + $0x10] sm:$0xff]
        %v461 = vld [vmem:[%s231 + $0x18] sm:$0xff]
        %v462 = vld [vmem:[%s231 + $0x20] sm:$0xff]
        %v463 = vld [vmem:[%s231 + $0x28] sm:$0xff]
        %v464 = vld [vmem:[%s231 + $0x30] sm:$0xff]
        %v465 = vld [vmem:[%s231 + $0x38] sm:$0xff]
        %v467 = vsel %vm328, %v458, 0
        %v470 = vsel %vm328, %v459, 0
        %v473 = vsel %vm328, %v460, 0
        %v476 = vsel %vm328, %v461, 0
        %v479 = vsel %vm328, %v462, 0
        %v482 = vsel %vm328, %v463, 0
        %v485 = vsel %vm328, %v464, 0
        %v488 = vsel %vm328, %v465, 0
        %490 = vmatprep.subr.mxu0 0.0
        %491 = vmatpush1.msra.mxu0 0.0
        %492 = vmatprep.subr.mxu0 0.0
        %493 = vmatpush1.msra.mxu0 0.0
        %494 = vmatprep.subr.mxu0 0.0
        %495 = vmatpush1.msra.mxu0 0.0
        %496 = vmatprep.subr.mxu0 0.0
        %497 = vmatpush1.msra.mxu0 0.0
        %498 = vmatprep.subr.mxu0 0.0
        %499 = vmatpush1.msra.mxu0 0.0
        %500 = vmatprep.subr.mxu0 0.0
        %501 = vmatpush1.msra.mxu0 0.0
        %502 = vmatprep.subr.mxu0 0.0
        %503 = vmatpush1.msra.mxu0 0.0
        %504 = vmatprep.subr.mxu0 0.0
        %505 = vmatpush1.msra.mxu0 0.0
        %506 = vmatprep.subr.mxu0 0.0
        %507 = vmatpush1.msra.mxu0 %v319
        %508 = vmatprep.subr.mxu0 0.0
        %509 = vmatpush1.msra.mxu0 %v318
        %510 = vmatprep.subr.mxu0 0.0
        %511 = vmatpush1.msra.mxu0 %v317
        %512 = vmatprep.subr.mxu0 0.0
        %513 = vmatpush1.msra.mxu0 %v316
        %514 = vmatprep.subr.mxu0 0.0
        %515 = vmatpush1.msra.mxu0 %v315
        %516 = vmatprep.subr.mxu0 0.0
        %517 = vmatpush1.msra.mxu0 %v314
        %518 = vmatprep.subr.mxu0 0.0
        %519 = vmatpush1.msra.mxu0 %v313
        %520 = vmatprep.subr.mxu0 0.0
        %521 = vmatpush1.msra.mxu0 %v312
        %522 = vmatprep.subr.mxu0 0.0
        %523 = vmatpush2.msra.mxu0 0.0
        %524 = vmatprep.subr.mxu0 0.0
        %525 = vmatpush2.msra.mxu0 0.0
        %526 = vmatprep.subr.mxu0 0.0
        %527 = vmatpush2.msra.mxu0 0.0
        %528 = vmatprep.subr.mxu0 0.0
        %529 = vmatpush2.msra.mxu0 0.0
        %530 = vmatprep.subr.mxu0 0.0
        %531 = vmatpush2.msra.mxu0 0.0
        %532 = vmatprep.subr.mxu0 0.0
        %533 = vmatpush2.msra.mxu0 0.0
        %534 = vmatprep.subr.mxu0 0.0
        %535 = vmatpush2.msra.mxu0 0.0
        %536 = vmatprep.subr.mxu0 0.0
        %537 = vmatpush2.msra.mxu0 0.0
        %538 = vmatprep.subr.mxu0 0.0
        %539 = vmatpush2.msra.mxu0 0.0
        %540 = vmatprep.subr.mxu0 0.0
        %541 = vmatpush2.msra.mxu0 0.0
        %542 = vmatprep.subr.mxu0 0.0
        %543 = vmatpush2.msra.mxu0 0.0
        %544 = vmatprep.subr.mxu0 0.0
        %545 = vmatpush2.msra.mxu0 0.0
        %546 = vmatprep.subr.mxu0 0.0
        %547 = vmatpush2.msra.mxu0 0.0
        %548 = vmatprep.subr.mxu0 0.0
        %549 = vmatpush2.msra.mxu0 0.0
        %550 = vmatprep.subr.mxu0 0.0
        %551 = vmatpush2.msra.mxu0 0.0
        %552 = vmatprep.subr.mxu0 0.0
        %553 = vmatpush2.msra.mxu0 0.0
        %554 = vmatprep.mubr.f32.mxu0 0.0
        %555 = vmatmul.mubr.f32.gmra.mxu0 %v467
        %v556 = vpop.f32.mrf.mxu0
        %v557 = vadd.f32 0.0, %v556
        %v558 = vpop.f32.mrf.mxu0
        %559 = vmatprep.mubr.f32.mxu0 0.0
        %560 = vmatmul.mubr.f32.gmra.mxu0 %v470
        %v561 = vpop.f32.mrf.mxu0
        %v562 = vadd.f32 0.0, %v561
        %v563 = vpop.f32.mrf.mxu0
        %564 = vmatprep.mubr.f32.mxu0 0.0
        %565 = vmatmul.mubr.f32.gmra.mxu0 %v473
        %v566 = vpop.f32.mrf.mxu0
        %v567 = vadd.f32 0.0, %v566
        %v568 = vpop.f32.mrf.mxu0
        %569 = vmatprep.mubr.f32.mxu0 0.0
        %570 = vmatmul.mubr.f32.gmra.mxu0 %v476
        %v571 = vpop.f32.mrf.mxu0
        %v572 = vadd.f32 0.0, %v571
        %v573 = vpop.f32.mrf.mxu0
        %574 = vmatprep.mubr.f32.mxu0 0.0
        %575 = vmatmul.mubr.f32.gmra.mxu0 %v479
        %v576 = vpop.f32.mrf.mxu0
        %v577 = vadd.f32 0.0, %v576
        %v578 = vpop.f32.mrf.mxu0
        %579 = vmatprep.mubr.f32.mxu0 0.0
        %580 = vmatmul.mubr.f32.gmra.mxu0 %v482
        %v581 = vpop.f32.mrf.mxu0
        %v582 = vadd.f32 0.0, %v581
        %v583 = vpop.f32.mrf.mxu0
        %584 = vmatprep.mubr.f32.mxu0 0.0
        %585 = vmatmul.mubr.f32.gmra.mxu0 %v485
        %v586 = vpop.f32.mrf.mxu0
        %v587 = vadd.f32 0.0, %v586
        %v588 = vpop.f32.mrf.mxu0
        %589 = vmatprep.mubr.f32.mxu0 0.0
        %590 = vmatmul.mubr.f32.gmra.mxu0 %v488
        %v591 = vpop.f32.mrf.mxu0
        %v592 = vadd.f32 0.0, %v591
        %v593 = vpop.f32.mrf.mxu0
        %594 = vdwg.mxu0
        %603 = vrot.lane.b32.xlu0 %v557, 112
        %v604 = vpop.permute.xlu0 %603
        %605 = vrot.lane.b32.xlu0 %v562, 112
        %v606 = vpop.permute.xlu0 %605
        %607 = vrot.lane.b32.xlu0 %v567, 112
        %v608 = vpop.permute.xlu0 %607
        %609 = vrot.lane.b32.xlu0 %v572, 112
        %v610 = vpop.permute.xlu0 %609
        %611 = vrot.lane.b32.xlu0 %v577, 112
        %v612 = vpop.permute.xlu0 %611
        %613 = vrot.lane.b32.xlu0 %v582, 112
        %v614 = vpop.permute.xlu0 %613
        %615 = vrot.lane.b32.xlu0 %v587, 112
        %v616 = vpop.permute.xlu0 %615
        %617 = vrot.lane.b32.xlu0 %v592, 112
        %v618 = vpop.permute.xlu0 %617
        %v627 = vsub.f32 %v420, %v604
        %v628 = vsub.f32 %v425, %v606
        %v629 = vsub.f32 %v430, %v608
        %v630 = vsub.f32 %v435, %v610
        %v631 = vsub.f32 %v440, %v612
        %v632 = vsub.f32 %v445, %v614
        %v633 = vsub.f32 %v450, %v616
        %v634 = vsub.f32 %v455, %v618
        %643 = vrot.lane.b32.xlu0 %v420, 112
        %v644 = vpop.permute.xlu0 %643
        %645 = vrot.lane.b32.xlu0 %v425, 112
        %v646 = vpop.permute.xlu0 %645
        %647 = vrot.lane.b32.xlu0 %v430, 112
        %v648 = vpop.permute.xlu0 %647
        %649 = vrot.lane.b32.xlu0 %v435, 112
        %v650 = vpop.permute.xlu0 %649
        %651 = vrot.lane.b32.xlu0 %v440, 112
        %v652 = vpop.permute.xlu0 %651
        %653 = vrot.lane.b32.xlu0 %v445, 112
        %v654 = vpop.permute.xlu0 %653
        %655 = vrot.lane.b32.xlu0 %v450, 112
        %v656 = vpop.permute.xlu0 %655
        %657 = vrot.lane.b32.xlu0 %v455, 112
        %v658 = vpop.permute.xlu0 %657
        %v667 = vadd.f32 %v557, %v644
        %v668 = vadd.f32 %v562, %v646
        %v669 = vadd.f32 %v567, %v648
        %v670 = vadd.f32 %v572, %v650
        %v671 = vadd.f32 %v577, %v652
        %v672 = vadd.f32 %v582, %v654
        %v673 = vadd.f32 %v587, %v656
        %v674 = vadd.f32 %v592, %v658
        %v675 = vld [vmem:[%s290] sm:$0xff]
        %v676 = vld [vmem:[%s290 + $0x8] sm:$0xff]
        %v677 = vld [vmem:[%s290 + $0x10] sm:$0xff]
        %v678 = vld [vmem:[%s290 + $0x18] sm:$0xff]
        %v679 = vld [vmem:[%s290 + $0x20] sm:$0xff]
        %v680 = vld [vmem:[%s290 + $0x28] sm:$0xff]
        %v681 = vld [vmem:[%s290 + $0x30] sm:$0xff]
        %v682 = vld [vmem:[%s290 + $0x38] sm:$0xff]
        %691 = vrot.lane.b32.xlu0 %v667, 16
        %v692 = vpop.permute.xlu0 %691
        %693 = vrot.lane.b32.xlu0 %v668, 16
        %v694 = vpop.permute.xlu0 %693
        %695 = vrot.lane.b32.xlu0 %v669, 16
        %v696 = vpop.permute.xlu0 %695
        %697 = vrot.lane.b32.xlu0 %v670, 16
        %v698 = vpop.permute.xlu0 %697
        %699 = vrot.lane.b32.xlu0 %v671, 16
        %v700 = vpop.permute.xlu0 %699
        %701 = vrot.lane.b32.xlu0 %v672, 16
        %v702 = vpop.permute.xlu0 %701
        %703 = vrot.lane.b32.xlu0 %v673, 16
        %v704 = vpop.permute.xlu0 %703
        %705 = vrot.lane.b32.xlu0 %v674, 16
        %v706 = vpop.permute.xlu0 %705
        %vm715 = vcmask 130048
        %v716 = vsel %vm715, %v627, %v692
        %v717 = vsel %vm715, %v628, %v694
        %v718 = vsel %vm715, %v629, %v696
        %v719 = vsel %vm715, %v630, %v698
        %v720 = vsel %vm715, %v631, %v700
        %v721 = vsel %vm715, %v632, %v702
        %v722 = vsel %vm715, %v633, %v704
        %v723 = vsel %vm715, %v634, %v706
        %v724 = vadd.f32 %v675, %v716
        %v725 = vadd.f32 %v676, %v717
        %v726 = vadd.f32 %v677, %v718
        %v727 = vadd.f32 %v678, %v719
        %v728 = vadd.f32 %v679, %v720
        %v729 = vadd.f32 %v680, %v721
        %v730 = vadd.f32 %v681, %v722
        %v731 = vadd.f32 %v682, %v723
        %vm732 = vcmask 261120
        %733 = vst.msk [vmem:[%s290] sm:$0xff] %vm732, %v724
        %734 = vst.msk [vmem:[%s290 + $0x8] sm:$0xff] %vm732, %v725
        %735 = vst.msk [vmem:[%s290 + $0x10] sm:$0xff] %vm732, %v726
        %736 = vst.msk [vmem:[%s290 + $0x18] sm:$0xff] %vm732, %v727
        %737 = vst.msk [vmem:[%s290 + $0x20] sm:$0xff] %vm732, %v728
        %738 = vst.msk [vmem:[%s290 + $0x28] sm:$0xff] %vm732, %v729
        %739 = vst.msk [vmem:[%s290 + $0x30] sm:$0xff] %vm732, %v730
        %740 = vst.msk [vmem:[%s290 + $0x38] sm:$0xff] %vm732, %v731
        %s741 = smul.u32 8, %s22
        %p742 = scmp.lt.s32.totalorder %s741, 7
        %s743 = scalar_select %p742, %s741, 7
        %s744 = smul.addr %s743, 8
        %s745 = scalar_lea.vmem %s4, %s744
        // Predicated region
        $region45: #{tpu_custom_call.1} parent=35 // pred_check
          %p746 = pneg %p151
        $region46: #{tpu_custom_call.1} parent=35 // pred_check_branch
          %748 = sbr.rel (%p746) target = $region48
        $region47: #{tpu_custom_call.1} parent=35 // pred_region
          %s749 = smul.u32 8, %s22
        $region48: #{tpu_custom_call.1} parent=35 // pred_fallthru
          _
        // Predicated region
        $region49: #{tpu_custom_call.1} parent=35 // pred_check
          %p750 = pneg %p151
        $region50: #{tpu_custom_call.1} parent=35 // pred_check_branch
          %752 = sbr.rel (%p750) target = $region52
        $region51: #{tpu_custom_call.1} parent=35 // pred_region
          %s753 = smul.u32 8, %s22
          %p754 = scmp.lt.s32.totalorder %s753, 7
          %s755 = scalar_select %p754, %s753, 7
          %s756 = smul.addr %s755, 8
          %s757 = scalar_lea.vmem %s4, %s756
        $region52: #{tpu_custom_call.1} parent=35 // pred_fallthru
          _
      $region36: #{tpu_custom_call.1} parent=5 // pred_fallthru
        _
      %p758 = scmp.le.s32.totalorder 2, %s13
      // Predicated region
      $region53: #{tpu_custom_call.1} parent=5 // pred_check
        %p759 = pneg %p758
      $region54: #{tpu_custom_call.1} parent=5 // pred_check_branch
        %761 = sbr.rel (%p759) target = $region56
      $region55: #{tpu_custom_call.1} parent=5 // pred_region
        %s762 = ssub.s32 %s13, 2
      $region56: #{tpu_custom_call.1} parent=5 // pred_fallthru
        _
    $region6: #{tpu_custom_call.1} parent=1 // loop_footer
      %s17 = sadd.s32 1, %s13
    $region7: #{tpu_custom_call.1} parent=1 // loop_footer_branch
      %12 = sbr.rel target = $region3
    $region8: #{tpu_custom_call.1} parent=1 // loop_exit
      _
    %763 = vsyncpa [#allocation3], 1
    %s764 = scalar_lea.sflag [#allocation3], 1
    %765 = vsyncpa %s764, 1

</llo_original>
